<compile_context>
chip_gen: v5e
topology: v5e:2x2
jax: 0.10.0
libtpu: 0.0.40
codegen_flags: <defaults>
</compile_context>

<pallas_src>
import math

import numpy as np
import jax
import jax.numpy as jnp
from jax.experimental import pallas as pl
from jax.experimental.pallas import tpu as pltpu


def _attn_kernel(xq_ref, xkv_ref, wqkv_ref, wproj_ref, bias_ref, o_ref,
                 q_scr, ctx_scr, acc_scr):
    # xq_ref:    (1, tq,  C)      bf16   q-row tile of x
    # xkv_ref:   (1, tkv, C)      bf16   kv-row tile of x
    # wqkv_ref:  (1, 3, C, hd)    bf16   this head's (q|k|v) projection weights
    # wproj_ref: (1, hd, C)       bf16   this head's slice of proj.T * (scale/N)
    # bias_ref:  (1, C)           f32    proj bias
    # o_ref:     (1, tq, C)              lane-dense output tile
    # q_scr:     (tq, hd)  bf16 scratch  (q cached across kv tiles)
    # ctx_scr:   (tq, hd)  f32  scratch  (per-head context, summed over kv)
    # acc_scr:   (tq, C)   f32  scratch  (output projection, summed over heads)
    h = pl.program_id(2)
    kv = pl.program_id(3)
    last_h = pl.num_programs(2) - 1
    last_kv = pl.num_programs(3) - 1

    @pl.when(jnp.logical_and(h == 0, kv == 0))
    def _():
        acc_scr[...] = jnp.zeros_like(acc_scr)

    # Leading-axis slices of the per-head weight block (no lane relayouts).
    wq = wqkv_ref[0, 0]                                   # (C, hd)
    wk = wqkv_ref[0, 1]
    wv = wqkv_ref[0, 2]

    @pl.when(kv == 0)
    def _():
        # q depends only on (b, q-tile, head): compute once, reuse over kv tiles.
        q_scr[...] = jnp.dot(xq_ref[0], wq,
                             preferred_element_type=jnp.float32).astype(q_scr.dtype)
        ctx_scr[...] = jnp.zeros_like(ctx_scr)

    xkv = xkv_ref[0]                                      # (tkv, C) bf16
    k = jnp.dot(xkv, wk, preferred_element_type=jnp.float32).astype(jnp.bfloat16)
    v = jnp.dot(xkv, wv, preferred_element_type=jnp.float32).astype(jnp.bfloat16)

    # scores = q @ k^T (contract over head_dim), f32 accumulation on the MXU.
    scores = jax.lax.dot_general(q_scr[...], k, (((1,), (1,)), ((), ())),
                                 preferred_element_type=jnp.float32)   # (tq, tkv)
    # ReLU + single cast back to bf16 (the scale/N constant lives in wproj).
    p = jnp.maximum(scores, 0.0).astype(jnp.bfloat16)
    ctx_scr[...] += jnp.dot(p, v, preferred_element_type=jnp.float32)  # (tq, hd)

    @pl.when(kv == last_kv)
    def _():
        # Per-head slice of the output projection accumulates straight into
        # the (tq, C) f32 accumulator; (scale / N) is pre-folded into wproj.
        acc_scr[...] += jnp.dot(ctx_scr[...].astype(jnp.bfloat16), wproj_ref[0],
                                preferred_element_type=jnp.float32)

    @pl.when(jnp.logical_and(h == last_h, kv == last_kv))
    def _():
        o_ref[0] = (acc_scr[...] + bias_ref[...]).astype(o_ref.dtype)


def _pick_tile(n, candidates):
    for t in candidates:
        if n % t == 0:
            return t
    return n  # fall back to a single full-extent tile


def attention_no_softmax(x, w_qkv, w_proj, b_proj, num_heads):
    """x: (B, N, C); w_qkv: (3C, C); w_proj: (C, C); b_proj: (C,)."""
    B, N, C = x.shape
    head_dim = C // num_heads
    scale = head_dim ** (-0.5)

    # Tile sizes: 256-multiples fill the v6e/v7x MXU; 128-multiples suit v5e;
    # fall back to the full (small) extent so toy shapes still work.
    tq = _pick_tile(N, (256, 128))
    tkv = _pick_tile(N, (512, 256, 128))
    num_q = N // tq
    num_kv = N // tkv

    f32 = jnp.float32
    # PyTorch qkv weight rows are ordered [3][H][hd]; rearrange to an
    # (H, 3, C, hd) "x @ W" layout so each head's weights are one block.
    w_qkv_heads = (w_qkv.astype(f32)
                   .reshape(3, num_heads, head_dim, C)
                   .transpose(1, 0, 3, 2)            # (H, 3, C, hd)
                   .astype(jnp.bfloat16))
    # Output projection per head with the positive constant scale/N folded in
    # (exact: ReLU is positively homogeneous and the projection is linear).
    w_proj_heads = ((w_proj.astype(f32).T * (scale / N))
                    .reshape(num_heads, head_dim, C) # (H, hd, C)
                    .astype(jnp.bfloat16))
    b_proj_2d = b_proj.astype(f32).reshape(1, C)
    x_bf = x.astype(jnp.bfloat16)

    grid = (B, num_q, num_heads, num_kv)

    in_specs = [
        pl.BlockSpec((1, tq, C), lambda b, qt, h, kv: (b, qt, 0)),        # x (q rows)
        pl.BlockSpec((1, tkv, C), lambda b, qt, h, kv: (b, kv, 0)),       # x (kv rows)
        pl.BlockSpec((1, 3, C, head_dim), lambda b, qt, h, kv: (h, 0, 0, 0)),
        pl.BlockSpec((1, head_dim, C), lambda b, qt, h, kv: (h, 0, 0)),
        pl.BlockSpec((1, C), lambda b, qt, h, kv: (0, 0)),
    ]
    out_specs = pl.BlockSpec((1, tq, C), lambda b, qt, h, kv: (b, qt, 0))

    scratch_shapes = [
        pltpu.VMEM((tq, head_dim), jnp.bfloat16),   # cached q for this head
        pltpu.VMEM((tq, head_dim), jnp.float32),    # per-head ctx (sum over kv)
        pltpu.VMEM((tq, C), jnp.float32),           # output-proj acc (sum over heads)
    ]

    out_itemsize = int(np.dtype(x.dtype).itemsize)
    flops = B * (2 * N * C * 3 * C                       # qkv projection
                 + 4 * num_heads * N * N * head_dim      # q@k^T and p@v
                 + 2 * N * C * C)                        # output projection
    bytes_accessed = (2 * B * N * C * 2                  # x (q + kv streams), bf16
                      + 4 * C * C * 2                    # qkv + proj weights, bf16
                      + C * 4                            # bias
                      + B * N * C * out_itemsize)        # output
    cost = pl.CostEstimate(flops=flops, transcendentals=0,
                           bytes_accessed=bytes_accessed)

    io_bytes = 2 * (tq * C * 2 + tkv * C * 2 + 3 * C * head_dim * 2
                    + head_dim * C * 2 + C * 4 + tq * C * out_itemsize)
    scratch_bytes = tq * head_dim * 2 + tq * head_dim * 4 + tq * C * 4
    vmem_limit = int(max(32 << 20,
                         min(64 << 20, 2 * (io_bytes + scratch_bytes) + (8 << 20))))

    return pl.pallas_call(
        _attn_kernel,
        out_shape=jax.ShapeDtypeStruct((B, N, C), x.dtype),
        grid_spec=pltpu.PrefetchScalarGridSpec(
            num_scalar_prefetch=0,
            grid=grid,
            in_specs=in_specs,
            out_specs=out_specs,
            scratch_shapes=scratch_shapes),
        compiler_params=pltpu.CompilerParams(
            dimension_semantics=("parallel", "parallel", "arbitrary", "arbitrary"),
            vmem_limit_bytes=vmem_limit),
        cost_estimate=cost,
    )(x_bf, x_bf, w_qkv_heads, w_proj_heads, b_proj_2d)


def _reference(x, w_qkv, w_proj, b_proj, num_heads):
    """Pure-JAX f32 reference matching the PyTorch forward exactly."""
    B, N, C = x.shape
    hd = C // num_heads
    scale = hd ** (-0.5)
    qkv = x @ w_qkv.T                                            # (B, N, 3C)
    qkv = qkv.reshape(B, N, 3, num_heads, hd).transpose(2, 0, 3, 1, 4)
    q, k, v = qkv[0], qkv[1], qkv[2]                             # (B, H, N, hd)
    attn = jnp.einsum("bhnd,bhmd->bhnm", q, k) * scale
    attn = jnp.maximum(attn, 0.0) / N
    out = jnp.einsum("bhnm,bhmd->bhnd", attn, v)
    out = out.transpose(0, 2, 1, 3).reshape(B, N, C)
    return out @ w_proj.T + b_proj


if __name__ == "__main__":
    # Small shapes consistent with the module: B=2, N=8 tokens, dim C=32, 8 heads.
    B, N, C, H = 2, 8, 32, 8

    key = jax.random.PRNGKey(0)
    kx, kqkv, kwp, kbp = jax.random.split(key, 4)

    x = jax.random.normal(kx, (B, N, C), dtype=jnp.float32)

    # Deterministic parameter init (qkv_bias=False per module default).
    bound = 1.0 / math.sqrt(C)
    w_qkv = jax.random.uniform(kqkv, (3 * C, C), jnp.float32, -bound, bound)
    w_proj = jax.random.uniform(kwp, (C, C), jnp.float32, -bound, bound)
    b_proj = jax.random.uniform(kbp, (C,), jnp.float32, -bound, bound)

    out = attention_no_softmax(x, w_qkv, w_proj, b_proj, num_heads=H)
    out = jax.block_until_ready(out)

    ref = _reference(x, w_qkv, w_proj, b_proj, num_heads=H)
    assert out.shape == (B, N, C)
    # bf16 MXU operands (f32 accumulation) -> ~1e-2-level deviation vs f32 ref.
    np.testing.assert_allclose(np.asarray(out), np.asarray(ref),
                               rtol=5e-2, atol=3e-2)

    print("KERNEL_OK")
</pallas_src>

<mosaic_0001>
module attributes {stable_mosaic.version = 11 : i64} {
  func.func @_attn_kernel(%arg0: i32, %arg1: i32, %arg2: i32, %arg3: i32, %arg4: memref<1x8x32xbf16, #tpu.memory_space<vmem>>, %arg5: memref<1x8x32xbf16, #tpu.memory_space<vmem>>, %arg6: memref<1x3x32x4xbf16, #tpu.memory_space<vmem>>, %arg7: memref<1x4x32xbf16, #tpu.memory_space<vmem>>, %arg8: memref<1x32xf32, #tpu.memory_space<vmem>>, %arg9: memref<1x8x32xf32, #tpu.memory_space<vmem>>, %arg10: memref<8x4xbf16, #tpu.memory_space<vmem>>, %arg11: memref<8x4xf32, #tpu.memory_space<vmem>>, %arg12: memref<8x32xf32, #tpu.memory_space<vmem>>) attributes {dimension_semantics = [#tpu.dimension_semantics<parallel>, #tpu.dimension_semantics<parallel>, #tpu.dimension_semantics<arbitrary>, #tpu.dimension_semantics<arbitrary>], iteration_bounds = array<i64: 2, 1, 8, 1>, scalar_prefetch = 0 : i64, scratch_operands = 3 : i64, tpu.core_type = #tpu.core_type<tc>, window_params = [{transform_indices = @transform_0, window_bounds = array<i64: 1, 8, 32>}, {transform_indices = @transform_1, window_bounds = array<i64: 1, 8, 32>}, {transform_indices = @transform_2, window_bounds = array<i64: 1, 3, 32, 4>}, {transform_indices = @transform_3, window_bounds = array<i64: 1, 4, 32>}, {pipeline_mode = #tpu.pipeline_mode<synchronous>, transform_indices = @transform_4, window_bounds = array<i64: 1, 32>}, {transform_indices = @transform_5, window_bounds = array<i64: 1, 8, 32>}]} {
    %c0_i32 = arith.constant 0 : i32
    %0 = arith.cmpi eq, %arg2, %c0_i32 : i32
    %c0_i32_0 = arith.constant 0 : i32
    %1 = arith.cmpi eq, %arg3, %c0_i32_0 : i32
    %2 = arith.andi %0, %1 : i1
    %3 = arith.extui %2 : i1 to i32
    %c0_i32_1 = arith.constant 0 : i32
    %4 = arith.cmpi ne, %3, %c0_i32_1 : i32
    scf.if %4 {
      %cst_30 = arith.constant 0.000000e+00 : f32
      %37 = vector.broadcast %cst_30 : f32 to vector<8x32xf32>
      %c0_31 = arith.constant 0 : index
      %c0_32 = arith.constant 0 : index
      %38 = vector.load %arg12[%c0_31, %c0_32] : memref<8x32xf32, #tpu.memory_space<vmem>>, vector<8x32xf32>
      tpu.vector_store %arg12[%c0_31, %c0_32], %37 {strides = array<i32>} : memref<8x32xf32, #tpu.memory_space<vmem>>, vector<8x32xf32>,
    } else {
    }
    %c0 = arith.constant 0 : index
    %c0_2 = arith.constant 0 : index
    %c0_3 = arith.constant 0 : index
    %c0_4 = arith.constant 0 : index
    %5 = vector.load %arg6[%c0, %c0_2, %c0_3, %c0_4] : memref<1x3x32x4xbf16, #tpu.memory_space<vmem>>, vector<1x1x32x4xbf16>
    %6 = vector.shape_cast %5 : vector<1x1x32x4xbf16> to vector<32x4xbf16>
    %c0_5 = arith.constant 0 : index
    %c1 = arith.constant 1 : index
    %c0_6 = arith.constant 0 : index
    %c0_7 = arith.constant 0 : index
    %7 = vector.load %arg6[%c0_5, %c1, %c0_6, %c0_7] : memref<1x3x32x4xbf16, #tpu.memory_space<vmem>>, vector<1x1x32x4xbf16>
    %8 = vector.shape_cast %7 : vector<1x1x32x4xbf16> to vector<32x4xbf16>
    %c0_8 = arith.constant 0 : index
    %c2 = arith.constant 2 : index
    %c0_9 = arith.constant 0 : index
    %c0_10 = arith.constant 0 : index
    %9 = vector.load %arg6[%c0_8, %c2, %c0_9, %c0_10] : memref<1x3x32x4xbf16, #tpu.memory_space<vmem>>, vector<1x1x32x4xbf16>
    %10 = vector.shape_cast %9 : vector<1x1x32x4xbf16> to vector<32x4xbf16>
    %c0_i32_11 = arith.constant 0 : i32
    %11 = arith.cmpi eq, %arg3, %c0_i32_11 : i32
    %12 = arith.extui %11 : i1 to i32
    %c0_i32_12 = arith.constant 0 : i32
    %13 = arith.cmpi ne, %12, %c0_i32_12 : i32
    scf.if %13 {
      %c0_30 = arith.constant 0 : index
      %c0_31 = arith.constant 0 : index
      %c0_32 = arith.constant 0 : index
      %37 = vector.load %arg4[%c0_30, %c0_31, %c0_32] : memref<1x8x32xbf16, #tpu.memory_space<vmem>>, vector<1x8x32xbf16>
      %38 = vector.shape_cast %37 : vector<1x8x32xbf16> to vector<8x32xbf16>
      %cst_33 = arith.constant dense<0.000000e+00> : vector<8x4xf32>
      %39 = tpu.matmul %38, %6, %cst_33 {dimension_numbers = #tpu.dot_dimension_numbers<[1], [0], [0], [1], [0, 0, 1, 1], [], []>} : vector<8x32xbf16>, vector<32x4xbf16>, vector<8x4xf32> -> vector<8x4xf32>
      %40 = arith.truncf %39 : vector<8x4xf32> to vector<8x4xbf16>
      %c0_34 = arith.constant 0 : index
      %c0_35 = arith.constant 0 : index
      %41 = vector.load %arg10[%c0_34, %c0_35] : memref<8x4xbf16, #tpu.memory_space<vmem>>, vector<8x4xbf16>
      tpu.vector_store %arg10[%c0_34, %c0_35], %40 {strides = array<i32>} : memref<8x4xbf16, #tpu.memory_space<vmem>>, vector<8x4xbf16>,
      %cst_36 = arith.constant 0.000000e+00 : f32
      %42 = vector.broadcast %cst_36 : f32 to vector<8x4xf32>
      %c0_37 = arith.constant 0 : index
      %c0_38 = arith.constant 0 : index
      %43 = vector.load %arg11[%c0_37, %c0_38] : memref<8x4xf32, #tpu.memory_space<vmem>>, vector<8x4xf32>
      tpu.vector_store %arg11[%c0_37, %c0_38], %42 {strides = array<i32>} : memref<8x4xf32, #tpu.memory_space<vmem>>, vector<8x4xf32>,
    } else {
    }
    %c0_13 = arith.constant 0 : index
    %c0_14 = arith.constant 0 : index
    %c0_15 = arith.constant 0 : index
    %14 = vector.load %arg5[%c0_13, %c0_14, %c0_15] : memref<1x8x32xbf16, #tpu.memory_space<vmem>>, vector<1x8x32xbf16>
    %15 = vector.shape_cast %14 : vector<1x8x32xbf16> to vector<8x32xbf16>
    %cst = arith.constant dense<0.000000e+00> : vector<8x4xf32>
    %16 = tpu.matmul %15, %8, %cst {dimension_numbers = #tpu.dot_dimension_numbers<[1], [0], [0], [1], [0, 0, 1, 1], [], []>} : vector<8x32xbf16>, vector<32x4xbf16>, vector<8x4xf32> -> vector<8x4xf32>
    %17 = arith.truncf %16 : vector<8x4xf32> to vector<8x4xbf16>
    %cst_16 = arith.constant dense<0.000000e+00> : vector<8x4xf32>
    %18 = tpu.matmul %15, %10, %cst_16 {dimension_numbers = #tpu.dot_dimension_numbers<[1], [0], [0], [1], [0, 0, 1, 1], [], []>} : vector<8x32xbf16>, vector<32x4xbf16>, vector<8x4xf32> -> vector<8x4xf32>
    %19 = arith.truncf %18 : vector<8x4xf32> to vector<8x4xbf16>
    %c0_17 = arith.constant 0 : index
    %c0_18 = arith.constant 0 : index
    %20 = vector.load %arg10[%c0_17, %c0_18] : memref<8x4xbf16, #tpu.memory_space<vmem>>, vector<8x4xbf16>
    %cst_19 = arith.constant dense<0.000000e+00> : vector<8x8xf32>
    %21 = tpu.matmul %20, %17, %cst_19 {dimension_numbers = #tpu.dot_dimension_numbers<[1], [1], [0], [0], [0, 0, 1, 0], [], []>} : vector<8x4xbf16>, vector<8x4xbf16>, vector<8x8xf32> -> vector<8x8xf32>
    %cst_20 = arith.constant 0.000000e+00 : f32
    %22 = vector.broadcast %cst_20 : f32 to vector<8x8xf32>
    %23 = arith.maximumf %21, %22 : vector<8x8xf32>
    %24 = arith.truncf %23 : vector<8x8xf32> to vector<8x8xbf16>
    %c0_21 = arith.constant 0 : index
    %c0_22 = arith.constant 0 : index
    %25 = vector.load %arg11[%c0_21, %c0_22] : memref<8x4xf32, #tpu.memory_space<vmem>>, vector<8x4xf32>
    %cst_23 = arith.constant dense<0.000000e+00> : vector<8x4xf32>
    %26 = tpu.matmul %24, %19, %cst_23 {dimension_numbers = #tpu.dot_dimension_numbers<[1], [0], [0], [1], [0, 0, 1, 1], [], []>} : vector<8x8xbf16>, vector<8x4xbf16>, vector<8x4xf32> -> vector<8x4xf32>
    %27 = arith.addf %25, %26 : vector<8x4xf32>
    %c0_24 = arith.constant 0 : index
    %c0_25 = arith.constant 0 : index
    %28 = vector.load %arg11[%c0_24, %c0_25] : memref<8x4xf32, #tpu.memory_space<vmem>>, vector<8x4xf32>
    tpu.vector_store %arg11[%c0_24, %c0_25], %27 {strides = array<i32>} : memref<8x4xf32, #tpu.memory_space<vmem>>, vector<8x4xf32>,
    %c0_i32_26 = arith.constant 0 : i32
    %29 = arith.cmpi eq, %arg3, %c0_i32_26 : i32
    %30 = arith.extui %29 : i1 to i32
    %c0_i32_27 = arith.constant 0 : i32
    %31 = arith.cmpi ne, %30, %c0_i32_27 : i32
    scf.if %31 {
      %c0_30 = arith.constant 0 : index
      %c0_31 = arith.constant 0 : index
      %37 = vector.load %arg12[%c0_30, %c0_31] : memref<8x32xf32, #tpu.memory_space<vmem>>, vector<8x32xf32>
      %c0_32 = arith.constant 0 : index
      %c0_33 = arith.constant 0 : index
      %38 = vector.load %arg11[%c0_32, %c0_33] : memref<8x4xf32, #tpu.memory_space<vmem>>, vector<8x4xf32>
      %39 = arith.truncf %38 : vector<8x4xf32> to vector<8x4xbf16>
      %c0_34 = arith.constant 0 : index
      %c0_35 = arith.constant 0 : index
      %c0_36 = arith.constant 0 : index
      %40 = vector.load %arg7[%c0_34, %c0_35, %c0_36] : memref<1x4x32xbf16, #tpu.memory_space<vmem>>, vector<1x4x32xbf16>
      %41 = vector.shape_cast %40 : vector<1x4x32xbf16> to vector<4x32xbf16>
      %cst_37 = arith.constant dense<0.000000e+00> : vector<8x32xf32>
      %42 = tpu.matmul %39, %41, %cst_37 {dimension_numbers = #tpu.dot_dimension_numbers<[1], [0], [0], [1], [0, 0, 1, 1], [], []>} : vector<8x4xbf16>, vector<4x32xbf16>, vector<8x32xf32> -> vector<8x32xf32>
      %43 = arith.addf %37, %42 : vector<8x32xf32>
      %c0_38 = arith.constant 0 : index
      %c0_39 = arith.constant 0 : index
      %44 = vector.load %arg12[%c0_38, %c0_39] : memref<8x32xf32, #tpu.memory_space<vmem>>, vector<8x32xf32>
      tpu.vector_store %arg12[%c0_38, %c0_39], %43 {strides = array<i32>} : memref<8x32xf32, #tpu.memory_space<vmem>>, vector<8x32xf32>,
    } else {
    }
    %c7_i32 = arith.constant 7 : i32
    %32 = arith.cmpi eq, %arg2, %c7_i32 : i32
    %c0_i32_28 = arith.constant 0 : i32
    %33 = arith.cmpi eq, %arg3, %c0_i32_28 : i32
    %34 = arith.andi %32, %33 : i1
    %35 = arith.extui %34 : i1 to i32
    %c0_i32_29 = arith.constant 0 : i32
    %36 = arith.cmpi ne, %35, %c0_i32_29 : i32
    scf.if %36 {
      %c0_30 = arith.constant 0 : index
      %c0_31 = arith.constant 0 : index
      %37 = vector.load %arg12[%c0_30, %c0_31] : memref<8x32xf32, #tpu.memory_space<vmem>>, vector<8x32xf32>
      %c0_32 = arith.constant 0 : index
      %c0_33 = arith.constant 0 : index
      %38 = vector.load %arg8[%c0_32, %c0_33] : memref<1x32xf32, #tpu.memory_space<vmem>>, vector<1x32xf32>
      %39 = vector.broadcast %38 : vector<1x32xf32> to vector<8x32xf32>
      %40 = arith.addf %37, %39 : vector<8x32xf32>
      %c0_34 = arith.constant 0 : index
      %c0_35 = arith.constant 0 : index
      %c0_36 = arith.constant 0 : index
      %41 = vector.load %arg9[%c0_34, %c0_35, %c0_36] : memref<1x8x32xf32, #tpu.memory_space<vmem>>, vector<1x8x32xf32>
      %42 = vector.shape_cast %41 : vector<1x8x32xf32> to vector<8x32xf32>
      %43 = vector.shape_cast %40 : vector<8x32xf32> to vector<1x8x32xf32>
      tpu.vector_store %arg9[%c0_34, %c0_35, %c0_36], %43 {strides = array<i32>} : memref<1x8x32xf32, #tpu.memory_space<vmem>>, vector<1x8x32xf32>,
    } else {
    }
    return
  }
  func.func @transform_0(%arg0: i32, %arg1: i32, %arg2: i32, %arg3: i32) -> (i32, i32, i32) {
    %c0_i32 = arith.constant 0 : i32
    %c0_i32_0 = arith.constant 0 : i32
    return %arg0, %arg1, %c0_i32 : i32, i32, i32
  }
  func.func @transform_1(%arg0: i32, %arg1: i32, %arg2: i32, %arg3: i32) -> (i32, i32, i32) {
    %c0_i32 = arith.constant 0 : i32
    %c0_i32_0 = arith.constant 0 : i32
    return %arg0, %arg3, %c0_i32 : i32, i32, i32
  }
  func.func @transform_2(%arg0: i32, %arg1: i32, %arg2: i32, %arg3: i32) -> (i32, i32, i32, i32) {
    %c0_i32 = arith.constant 0 : i32
    %c0_i32_0 = arith.constant 0 : i32
    %c0_i32_1 = arith.constant 0 : i32
    %c0_i32_2 = arith.constant 0 : i32
    return %arg2, %c0_i32, %c0_i32_0, %c0_i32_1 : i32, i32, i32, i32
  }
  func.func @transform_3(%arg0: i32, %arg1: i32, %arg2: i32, %arg3: i32) -> (i32, i32, i32) {
    %c0_i32 = arith.constant 0 : i32
    %c0_i32_0 = arith.constant 0 : i32
    %c0_i32_1 = arith.constant 0 : i32
    return %arg2, %c0_i32, %c0_i32_0 : i32, i32, i32
  }
  func.func @transform_4(%arg0: i32, %arg1: i32, %arg2: i32, %arg3: i32) -> (i32, i32) {
    %c0_i32 = arith.constant 0 : i32
    %c0_i32_0 = arith.constant 0 : i32
    %c0_i32_1 = arith.constant 0 : i32
    return %c0_i32, %c0_i32_0 : i32, i32
  }
  func.func @transform_5(%arg0: i32, %arg1: i32, %arg2: i32, %arg3: i32) -> (i32, i32, i32) {
    %c0_i32 = arith.constant 0 : i32
    %c0_i32_0 = arith.constant 0 : i32
    return %arg0, %arg1, %c0_i32 : i32, i32, i32
  }
}

</mosaic_0001>

<llo_original>
// kernel: tpu_custom_call.1
$region0: #{tpu_custom_call.1}
  #allocation0 [shape = 'u32[]', space=smem, size = 0x4, offset = 0x4, fixed_abs, tag = 'smem constant byte address 0x4 - core index']
  #allocation1 [shape = 'u32[72,128]{1,0:T(1,128)}', space=vmem, size = 0x9000, scoped, tag = 'internal scratch']
  #allocation2 [shape = 'bf16[8,4]{1,0:T(8,128)(2,1)}', space=vmem, size = 0x800, scoped, tag = 'scratch operand']
  #allocation3 [shape = 'f32[8,4]{1,0:T(8,128)}', space=vmem, size = 0x1000, scoped, tag = 'scratch operand']
  #allocation4 [shape = 'f32[8,32]{1,0:T(8,128)}', space=vmem, size = 0x1000, scoped, tag = 'scratch operand']
  %s0 = inlined_call_operand.vmem [shape: bf16[2,8,32], index: 0, kind: input, shape index: {}]
  %s1 = inlined_call_operand.vmem [shape: bf16[2,8,32], index: 1, kind: input, shape index: {}]
  %s2 = inlined_call_operand.vmem [shape: bf16[8,3,32,4], index: 2, kind: input, shape index: {}]
  %s3 = inlined_call_operand.vmem [shape: bf16[8,4,32], index: 3, kind: input, shape index: {}]
  %s4 = inlined_call_operand.vmem [shape: f32[1,32], index: 4, kind: input, shape index: {}]
  %s5 = inlined_call_operand.hbm [shape: f32[2,8,32], index: 5, kind: output, shape index: {}]
  %s6 = sld [smem:[#allocation0]]
  $region69: #{tpu_custom_call.1} parent=0
    _
  %s8 = ssub.s32 1, %s6
  %s9 = scalar_select 0, %s8, %s6
  $region1: #{tpu_custom_call.1} parent=0
    #allocation5 [shape = 'u8[8192]{0}', space=vmem, size = 0x2000, scoped, tag = 'output window, operand 0']
    #allocation6 [shape = 's32[2]{0}', space=sflag, size = 0x8, scoped, tag = 'scoped memory for tpu_custom_call.1']
    %10 = vsyncpa [#allocation6], 0
    %s11 = scalar_lea.sflag [#allocation6], 1
    %12 = vsyncpa %s11, 0
    loop: start=0, step=1, limit=18
    $region2: #{tpu_custom_call.1} parent=1 // loop_pre_header
      _
    $region3: #{tpu_custom_call.1} parent=1 // loop_header
      %s14 = sphi 0, %s18
      %p15 = scmp.ge.s32.totalorder %s14, 18
      %s21 = sphi 0, %s47
      %s22 = sphi 0, %s43
      %s23 = sphi 0, %s39
      %s24 = sphi 0, %s35
      %s25 = sphi 0, %s21
      %s26 = sphi 0, %s22
      %s27 = sphi 0, %s23
      %s28 = sphi 0, %s24
      %s29 = sphi 0, %s25
      %s30 = sphi 0, %s26
      %s31 = sphi 0, %s27
      %s32 = sphi 0, %s28
      %s52 = sphi 0, %s54
      %s55 = sphi 0, %s52
      %s56 = sphi 0, %s55
      %s72 = sphi 0, %s56
      %s80 = sphi 0, %s82
      %s83 = sphi 0, %s80
      %s84 = sphi 0, %s83
      %s100 = sphi 0, %s84
      %s106 = sphi 0, %s108
      %s109 = sphi 0, %s106
      %s110 = sphi 0, %s109
      %s126 = sphi 0, %s110
      %s132 = sphi 0, %s134
      %s135 = sphi 0, %s132
      %s136 = sphi 0, %s135
      %s152 = sphi 0, %s136
      %s156 = sphi 0, %s156
      %s158 = sphi 0, %s156
      %s159 = sphi 0, %s158
      %s173 = sphi 0, %s159
      %s181 = sphi 0, %s183
      %s184 = sphi 0, %s181
      %s185 = sphi 0, %s184
      %s201 = sphi 0, %s185
    $region4: #{tpu_custom_call.1} parent=1 // loop_header_branch
      %17 = sbr.rel (%p15) target = $region8
    $region5: #{tpu_custom_call.1} parent=1 // loop_body
      %s19 = ssub.s32 %s14, 1
      %s20 = ssub.s32 %s14, 2
      %s33 = sadd.s32 1, %s24
      %p34 = scmp.ge.s32.totalorder %s33, 1
      %s35 = scalar_select %p34, 0, %s33
      %s36 = sadd.s32 1, %s23
      %s37 = scalar_select %p34, %s36, %s23
      %p38 = scmp.ge.s32.totalorder %s37, 8
      %s39 = scalar_select %p38, 0, %s37
      %s40 = sadd.s32 1, %s22
      %s41 = scalar_select %p38, %s40, %s22
      %p42 = scmp.ge.s32.totalorder %s41, 1
      %s43 = scalar_select %p42, 0, %s41
      %s44 = sadd.s32 1, %s21
      %s45 = scalar_select %p42, %s44, %s21
      %p46 = scmp.ge.s32.totalorder %s45, 2
      %s47 = scalar_select %p46, 0, %s45
      %s48 = ssub.s32 %s21, %s47
      %s49 = ssub.s32 %s22, %s43
      %s50 = sor.u32 %s48, %s49
      %p51 = scmp.eq.s32.totalorder %s50, 0
      %s53 = sadd.s32 %s52, 1
      %s54 = scalar_select %p51, %s52, %s53
      %p57 = pneg %p51
      %p58 = scmp.eq.s32.totalorder %s14, 15
      %p59 = por %p57, %p58
      %p60 = scmp.ne.s32.totalorder %s52, %s55
      %p61 = scmp.eq.s32.totalorder %s14, 0
      %p62 = por %p60, %p61
      %p63 = scmp.ne.s32.totalorder %s52, %s55
      %p64 = scmp.eq.s32.totalorder %s19, 15
      %p65 = por %p63, %p64
      %p66 = scmp.ne.s32.totalorder %s55, %s56
      %p67 = scmp.eq.s32.totalorder %s19, 0
      %p68 = por %p66, %p67
      %p69 = scmp.ne.s32.totalorder %s55, %s56
      %p70 = scmp.eq.s32.totalorder %s20, 15
      %p71 = por %p69, %p70
      %p73 = scmp.ne.s32.totalorder %s56, %s72
      %p74 = scmp.eq.s32.totalorder %s20, 0
      %p75 = por %p73, %p74
      %s76 = ssub.s32 %s21, %s47
      %s77 = ssub.s32 %s24, %s35
      %s78 = sor.u32 %s76, %s77
      %p79 = scmp.eq.s32.totalorder %s78, 0
      %s81 = sadd.s32 %s80, 1
      %s82 = scalar_select %p79, %s80, %s81
      %p85 = pneg %p79
      %p86 = scmp.eq.s32.totalorder %s14, 15
      %p87 = por %p85, %p86
      %p88 = scmp.ne.s32.totalorder %s80, %s83
      %p89 = scmp.eq.s32.totalorder %s14, 0
      %p90 = por %p88, %p89
      %p91 = scmp.ne.s32.totalorder %s80, %s83
      %p92 = scmp.eq.s32.totalorder %s19, 15
      %p93 = por %p91, %p92
      %p94 = scmp.ne.s32.totalorder %s83, %s84
      %p95 = scmp.eq.s32.totalorder %s19, 0
      %p96 = por %p94, %p95
      %p97 = scmp.ne.s32.totalorder %s83, %s84
      %p98 = scmp.eq.s32.totalorder %s20, 15
      %p99 = por %p97, %p98
      %p101 = scmp.ne.s32.totalorder %s84, %s100
      %p102 = scmp.eq.s32.totalorder %s20, 0
      %p103 = por %p101, %p102
      %s104 = ssub.s32 %s23, %s39
      %p105 = scmp.eq.s32.totalorder %s104, 0
      %s107 = sadd.s32 %s106, 1
      %s108 = scalar_select %p105, %s106, %s107
      %p111 = pneg %p105
      %p112 = scmp.eq.s32.totalorder %s14, 15
      %p113 = por %p111, %p112
      %p114 = scmp.ne.s32.totalorder %s106, %s109
      %p115 = scmp.eq.s32.totalorder %s14, 0
      %p116 = por %p114, %p115
      %p117 = scmp.ne.s32.totalorder %s106, %s109
      %p118 = scmp.eq.s32.totalorder %s19, 15
      %p119 = por %p117, %p118
      %p120 = scmp.ne.s32.totalorder %s109, %s110
      %p121 = scmp.eq.s32.totalorder %s19, 0
      %p122 = por %p120, %p121
      %p123 = scmp.ne.s32.totalorder %s109, %s110
      %p124 = scmp.eq.s32.totalorder %s20, 15
      %p125 = por %p123, %p124
      %p127 = scmp.ne.s32.totalorder %s110, %s126
      %p128 = scmp.eq.s32.totalorder %s20, 0
      %p129 = por %p127, %p128
      %s130 = ssub.s32 %s23, %s39
      %p131 = scmp.eq.s32.totalorder %s130, 0
      %s133 = sadd.s32 %s132, 1
      %s134 = scalar_select %p131, %s132, %s133
      %p137 = pneg %p131
      %p138 = scmp.eq.s32.totalorder %s14, 15
      %p139 = por %p137, %p138
      %p140 = scmp.ne.s32.totalorder %s132, %s135
      %p141 = scmp.eq.s32.totalorder %s14, 0
      %p142 = por %p140, %p141
      %p143 = scmp.ne.s32.totalorder %s132, %s135
      %p144 = scmp.eq.s32.totalorder %s19, 15
      %p145 = por %p143, %p144
      %p146 = scmp.ne.s32.totalorder %s135, %s136
      %p147 = scmp.eq.s32.totalorder %s19, 0
      %p148 = por %p146, %p147
      %p149 = scmp.ne.s32.totalorder %s135, %s136
      %p150 = scmp.eq.s32.totalorder %s20, 15
      %p151 = por %p149, %p150
      %p153 = scmp.ne.s32.totalorder %s136, %s152
      %p154 = scmp.eq.s32.totalorder %s20, 0
      %p155 = por %p153, %p154
      %s157 = sadd.s32 %s156, 1
      %p160 = scmp.eq.s32.totalorder %s14, 15
      %p161 = scmp.ne.s32.totalorder %s156, %s158
      %p162 = scmp.eq.s32.totalorder %s14, 0
      %p163 = por %p161, %p162
      %p164 = scmp.ne.s32.totalorder %s156, %s158
      %p165 = scmp.eq.s32.totalorder %s19, 15
      %p166 = por %p164, %p165
      %p167 = scmp.ne.s32.totalorder %s158, %s159
      %p168 = scmp.eq.s32.totalorder %s19, 0
      %p169 = por %p167, %p168
      %p170 = scmp.ne.s32.totalorder %s158, %s159
      %p171 = scmp.eq.s32.totalorder %s20, 15
      %p172 = por %p170, %p171
      %p174 = scmp.ne.s32.totalorder %s159, %s173
      %p175 = scmp.eq.s32.totalorder %s20, 0
      %p176 = por %p174, %p175
      %s177 = ssub.s32 %s21, %s47
      %s178 = ssub.s32 %s22, %s43
      %s179 = sor.u32 %s177, %s178
      %p180 = scmp.eq.s32.totalorder %s179, 0
      %s182 = sadd.s32 %s181, 1
      %s183 = scalar_select %p180, %s181, %s182
      %p186 = pneg %p180
      %p187 = scmp.eq.s32.totalorder %s14, 15
      %p188 = por %p186, %p187
      %p189 = scmp.ne.s32.totalorder %s181, %s184
      %p190 = scmp.eq.s32.totalorder %s14, 0
      %p191 = por %p189, %p190
      %p192 = scmp.ne.s32.totalorder %s181, %s184
      %p193 = scmp.eq.s32.totalorder %s19, 15
      %p194 = por %p192, %p193
      %p195 = scmp.ne.s32.totalorder %s184, %s185
      %p196 = scmp.eq.s32.totalorder %s19, 0
      %p197 = por %p195, %p196
      %p198 = scmp.ne.s32.totalorder %s184, %s185
      %p199 = scmp.eq.s32.totalorder %s20, 15
      %p200 = por %p198, %p199
      %p202 = scmp.ne.s32.totalorder %s185, %s201
      %p203 = scmp.eq.s32.totalorder %s20, 0
      %p204 = por %p202, %p203
      %p205 = scmp.le.s32.totalorder 1, %s14
      %p206 = scmp.lt.s32.totalorder %s14, 17
      %p207 = pnand %p205, %p206
      %p208 = pneg %p207
      // Predicated region
      $region9: #{tpu_custom_call.1} parent=5 // pred_check
        _
      $region10: #{tpu_custom_call.1} parent=5 // pred_check_branch
        %210 = sbr.rel (%p207) target = $region12
      $region11: #{tpu_custom_call.1} parent=5 // pred_region
        %s211 = ssub.s32 %s14, 1
        // Predicated region
        $region13: #{tpu_custom_call.1} parent=11 // pred_check
          %p212 = pneg %p169
        $region14: #{tpu_custom_call.1} parent=11 // pred_check_branch
          %214 = sbr.rel (%p212) target = $region16
        $region15: #{tpu_custom_call.1} parent=11 // pred_region
          _
        $region16: #{tpu_custom_call.1} parent=11 // pred_fallthru
          _
      $region12: #{tpu_custom_call.1} parent=5 // pred_fallthru
        _
      %p215 = scmp.lt.s32.totalorder %s14, 16
      // Predicated region
      $region17: #{tpu_custom_call.1} parent=5 // pred_check
        %p216 = pneg %p215
      $region18: #{tpu_custom_call.1} parent=5 // pred_check_branch
        %218 = sbr.rel (%p216) target = $region20
      $region19: #{tpu_custom_call.1} parent=5 // pred_region
        // Predicated region
        $region21: #{tpu_custom_call.1} parent=19 // pred_check
          %p219 = pneg %p62
        $region22: #{tpu_custom_call.1} parent=19 // pred_check_branch
          %221 = sbr.rel (%p219) target = $region24
        $region23: #{tpu_custom_call.1} parent=19 // pred_region
          %p222 = scmp.lt.s32.totalorder %s21, 1
          %s223 = scalar_select %p222, %s21, 1
          %p224 = scmp.lt.s32.totalorder %s22, 0
          %s225 = scalar_select %p224, %s22, 0
          %s226 = sadd.s32 %s225, %s223
          %s227 = smul.addr %s226, 4
          %s228 = scalar_lea.vmem %s0, %s227
        $region24: #{tpu_custom_call.1} parent=19 // pred_fallthru
          _
        // Predicated region
        $region25: #{tpu_custom_call.1} parent=19 // pred_check
          %p229 = pneg %p90
        $region26: #{tpu_custom_call.1} parent=19 // pred_check_branch
          %231 = sbr.rel (%p229) target = $region28
        $region27: #{tpu_custom_call.1} parent=19 // pred_region
          %p232 = scmp.lt.s32.totalorder %s21, 1
          %s233 = scalar_select %p232, %s21, 1
          %p234 = scmp.lt.s32.totalorder %s24, 0
          %s235 = scalar_select %p234, %s24, 0
          %s236 = sadd.s32 %s235, %s233
          %s237 = smul.addr %s236, 4
          %s238 = scalar_lea.vmem %s1, %s237
        $region28: #{tpu_custom_call.1} parent=19 // pred_fallthru
          _
        // Predicated region
        $region29: #{tpu_custom_call.1} parent=19 // pred_check
          %p239 = pneg %p116
        $region30: #{tpu_custom_call.1} parent=19 // pred_check_branch
          %241 = sbr.rel (%p239) target = $region32
        $region31: #{tpu_custom_call.1} parent=19 // pred_region
          %p242 = scmp.lt.s32.totalorder %s23, 7
          %s243 = scalar_select %p242, %s23, 7
          %s244 = smul.addr %s243, 12
          %s245 = smul.addr %s244, 4
          %s246 = scalar_lea.vmem %s2, %s245
        $region32: #{tpu_custom_call.1} parent=19 // pred_fallthru
          _
        // Predicated region
        $region33: #{tpu_custom_call.1} parent=19 // pred_check
          %p247 = pneg %p142
        $region34: #{tpu_custom_call.1} parent=19 // pred_check_branch
          %249 = sbr.rel (%p247) target = $region36
        $region35: #{tpu_custom_call.1} parent=19 // pred_region
          %p250 = scmp.lt.s32.totalorder %s23, 7
          %s251 = scalar_select %p250, %s23, 7
          %s252 = smul.addr %s251, 2
          %s253 = scalar_lea.vmem %s3, %s252
        $region36: #{tpu_custom_call.1} parent=19 // pred_fallthru
          _
      $region20: #{tpu_custom_call.1} parent=5 // pred_fallthru
        _
      %p254 = scmp.le.s32.totalorder 1, %s14
      %p255 = scmp.lt.s32.totalorder %s14, 17
      %p256 = pnand %p254, %p255
      %p257 = pneg %p256
      // Predicated region
      $region37: #{tpu_custom_call.1} parent=5 // pred_check
        _
      $region38: #{tpu_custom_call.1} parent=5 // pred_check_branch
        %259 = sbr.rel (%p256) target = $region40
      $region39: #{tpu_custom_call.1} parent=5 // pred_region
        %s260 = ssub.s32 %s14, 1
        %p261 = scmp.lt.s32.totalorder %s25, 1
        %s262 = scalar_select %p261, %s25, 1
        %p263 = scmp.lt.s32.totalorder %s26, 0
        %s264 = scalar_select %p263, %s26, 0
        %s265 = sadd.s32 %s264, %s262
        %s266 = smul.addr %s265, 4
        %s267 = scalar_lea.vmem %s0, %s266
        %p268 = pneg %p68
        %p269 = pneg %p65
        %p270 = scmp.lt.s32.totalorder %s25, 1
        %s271 = scalar_select %p270, %s25, 1
        %p272 = scmp.lt.s32.totalorder %s28, 0
        %s273 = scalar_select %p272, %s28, 0
        %s274 = sadd.s32 %s273, %s271
        %s275 = smul.addr %s274, 4
        %s276 = scalar_lea.vmem %s1, %s275
        %p277 = pneg %p96
        %p278 = pneg %p93
        %p279 = scmp.lt.s32.totalorder %s27, 7
        %s280 = scalar_select %p279, %s27, 7
        %s281 = smul.addr %s280, 12
        %s282 = smul.addr %s281, 4
        %s283 = scalar_lea.vmem %s2, %s282
        %p284 = pneg %p122
        %p285 = pneg %p119
        %p286 = scmp.lt.s32.totalorder %s27, 7
        %s287 = scalar_select %p286, %s27, 7
        %s288 = smul.addr %s287, 2
        %s289 = scalar_lea.vmem %s3, %s288
        %p290 = pneg %p148
        %p291 = pneg %p145
        %p292 = pneg %p169
        %p293 = pneg %p166
        %p294 = pneg %p197
        %p295 = pneg %p194
        %s296 = sand.u32 %s184, 1
        %s297 = scalar_lea.sflag [#allocation6], %s296
        %s298 = sand.u32 %s184, 1
        %s299 = smul.addr %s298, 8
        %s300 = scalar_lea.vmem [#allocation5], %s299
        %p301 = scmp.lt.s32.totalorder %s25, 1
        %s302 = scalar_select %p301, %s25, 1
        %p303 = scmp.lt.s32.totalorder %s26, 0
        %s304 = scalar_select %p303, %s26, 0
        %s305 = sadd.s32 %s304, %s302
        %s306 = smul.addr %s305, 4
        %s307 = scalar_lea.vmem %s0, %s306
        %p308 = scmp.lt.s32.totalorder %s25, 1
        %s309 = scalar_select %p308, %s25, 1
        %p310 = scmp.lt.s32.totalorder %s28, 0
        %s311 = scalar_select %p310, %s28, 0
        %s312 = sadd.s32 %s311, %s309
        %s313 = smul.addr %s312, 4
        %s314 = scalar_lea.vmem %s1, %s313
        %p315 = scmp.lt.s32.totalorder %s27, 7
        %s316 = scalar_select %p315, %s27, 7
        %s317 = smul.addr %s316, 12
        %s318 = smul.addr %s317, 4
        %s319 = scalar_lea.vmem %s2, %s318
        %p320 = scmp.lt.s32.totalorder %s27, 7
        %s321 = scalar_select %p320, %s27, 7
        %s322 = smul.addr %s321, 2
        %s323 = scalar_lea.vmem %s3, %s322
        %p325 = scmp.eq.s32.totalorder %s27, 0
        %p326 = scmp.eq.s32.totalorder %s28, 0
        %p327 = pnand %p325, %p326
        %p328 = pneg %p327
        // Predicated region
        $region41: #{tpu_custom_call.1} parent=39 // pred_check
          _
        $region42: #{tpu_custom_call.1} parent=39 // pred_check_branch
          %330 = sbr.rel (%p327) target = $region44
        $region43: #{tpu_custom_call.1} parent=39 // pred_region
          %vm331 = vcmask 261120
          %332 = vst.msk [vmem:[#allocation4] sm:$0xff] %vm331, 0.0
        $region44: #{tpu_custom_call.1} parent=39 // pred_fallthru
          _
        %v333 = vld [vmem:[%s319] sm:$0xf]
        %v334 = vld [vmem:[%s319 + $0x4] sm:$0xf]
        %v335 = vld [vmem:[%s319 + $0x8] sm:$0xf]
        %v336 = vld [vmem:[%s319 + $0xc] sm:$0xf]
        %s337 = scalar_lea.vmem %s319, 16
        %v338 = vld [vmem:[%s337] sm:$0xf]
        %v339 = vld [vmem:[%s337 + $0x4] sm:$0xf]
        %v340 = vld [vmem:[%s337 + $0x8] sm:$0xf]
        %v341 = vld [vmem:[%s337 + $0xc] sm:$0xf]
        %s342 = scalar_lea.vmem %s319, 32
        %v343 = vld [vmem:[%s342] sm:$0xf]
        %v344 = vld [vmem:[%s342 + $0x4] sm:$0xf]
        %v345 = vld [vmem:[%s342 + $0x8] sm:$0xf]
        %v346 = vld [vmem:[%s342 + $0xc] sm:$0xf]
        // Predicated region
        $region45: #{tpu_custom_call.1} parent=39 // pred_check
          %p347 = pneg %p326
        $region46: #{tpu_custom_call.1} parent=39 // pred_check_branch
          %349 = sbr.rel (%p347) target = $region48
        $region47: #{tpu_custom_call.1} parent=39 // pred_region
          %v350 = vld [vmem:[%s307] sm:$0xf]
          %v355 = vunpack.c.l.b16 %v333
          %v356 = vunpack.c.l.b16 %v334
          %v357 = vunpack.c.l.b16 %v335
          %v358 = vunpack.c.l.b16 %v336
          %v359 = vpack.c.b16 %v356, %v355
          %v360 = vpack.c.b16 %v358, %v357
          %vm363 = vcmask 261120
          %v365 = vsel %vm363, %v350, 0
          %367 = vmatpush.bf16.msra.mxu0 0
          %368 = vmatpush.bf16.msra.mxu0 0
          %369 = vmatpush.bf16.msra.mxu0 0
          %370 = vmatpush.bf16.msra.mxu0 0
          %371 = vmatpush.bf16.msra.mxu0 0
          %372 = vmatpush.bf16.msra.mxu0 0
          %373 = vmatpush.bf16.msra.mxu0 %v360
          %374 = vmatpush.bf16.msra.mxu0 %v359
          %375 = vmatmul.bf16.gmra.mxu0 %v365
          %v376 = vpop.f32.mrf.mxu0
          %v377 = vadd.f32 0.0, %v376
          %v378 = vpop.f32.mrf.mxu0
          %379 = vdwg.mxu0
          %v380 = vpack.c.bf16 %v377, %v377
          %vm381 = vcmask 27648
          %382 = vst.msk [vmem:[#allocation2] sm:$0xf] %vm381, %v380
          %vm383 = vcmask 31744
          %384 = vst.msk [vmem:[#allocation3] sm:$0xff] %vm383, 0.0
        $region48: #{tpu_custom_call.1} parent=39 // pred_fallthru
          _
        %v385 = vld [vmem:[%s314] sm:$0xf]
        %v390 = vunpack.c.l.b16 %v338
        %v391 = vunpack.c.l.b16 %v339
        %v392 = vunpack.c.l.b16 %v340
        %v393 = vunpack.c.l.b16 %v341
        %v394 = vpack.c.b16 %v391, %v390
        %v395 = vpack.c.b16 %v393, %v392
        %vm398 = vcmask 261120
        %v400 = vsel %vm398, %v385, 0
        %402 = vmatpush.bf16.msra.mxu0 0
        %403 = vmatpush.bf16.msra.mxu0 0
        %404 = vmatpush.bf16.msra.mxu0 0
        %405 = vmatpush.bf16.msra.mxu0 0
        %406 = vmatpush.bf16.msra.mxu0 0
        %407 = vmatpush.bf16.msra.mxu0 0
        %408 = vmatpush.bf16.msra.mxu0 %v395
        %409 = vmatpush.bf16.msra.mxu0 %v394
        %410 = vmatmul.bf16.gmra.mxu0 %v400
        %v411 = vpop.f32.mrf.mxu0
        %v412 = vadd.f32 0.0, %v411
        %v413 = vpop.f32.mrf.mxu0
        %414 = vdwg.mxu0
        %v415 = vpack.c.bf16 %v412, %v412
        %v420 = vunpack.c.l.b16 %v343
        %v421 = vunpack.c.l.b16 %v344
        %v422 = vunpack.c.l.b16 %v345
        %v423 = vunpack.c.l.b16 %v346
        %v424 = vpack.c.b16 %v421, %v420
        %v425 = vpack.c.b16 %v423, %v422
        %428 = vmatpush.bf16.msra.mxu0 0
        %429 = vmatpush.bf16.msra.mxu0 0
        %430 = vmatpush.bf16.msra.mxu0 0
        %431 = vmatpush.bf16.msra.mxu0 0
        %432 = vmatpush.bf16.msra.mxu0 0
        %433 = vmatpush.bf16.msra.mxu0 0
        %434 = vmatpush.bf16.msra.mxu0 %v425
        %435 = vmatpush.bf16.msra.mxu0 %v424
        %436 = vmatmul.bf16.gmra.mxu0 %v400
        %v437 = vpop.f32.mrf.mxu0
        %v438 = vadd.f32 0.0, %v437
        %v439 = vpop.f32.mrf.mxu0
        %440 = vdwg.mxu0
        %v441 = vpack.c.bf16 %v438, %v438
        %v442 = vld [vmem:[#allocation2] sm:$0xf]
        %vm443 = vcmask 31744
        %v445 = vsel %vm443, %v442, 0
        %v448 = vsel %vm443, %v415, 0
        %450 = vmatpush.bf16.xpose.msra.mxu0 0
        %451 = vmatpush.bf16.xpose.msra.mxu0 0
        %452 = vmatpush.bf16.xpose.msra.mxu0 0
        %453 = vmatpush.bf16.xpose.msra.mxu0 0
        %454 = vmatpush.bf16.xpose.msra.mxu0 0
        %455 = vmatpush.bf16.xpose.msra.mxu0 0
        %456 = vmatpush.bf16.xpose.msra.mxu0 0
        %457 = vmatpush.bf16.xpose.msra.mxu0 %v448
        %458 = vmatmul.bf16.gmra.mxu0 %v445
        %v459 = vpop.f32.mrf.mxu0
        %v460 = vadd.f32 0.0, %v459
        %v461 = vpop.f32.mrf.mxu0
        %462 = vdwg.mxu0
        %v463 = vmax.f32 %v460, 0.0
        %v464 = vpack.c.bf16 %v463, %v463
        %v465 = vld [vmem:[#allocation3] sm:$0xff]
        %vm466 = vcmask 64512
        %v468 = vsel %vm466, %v464, 0
        %vm470 = vcmask 1043456
        %v472 = vsel %vm470, %v441, 0
        %474 = vmatpush.bf16.msra.mxu0 0
        %475 = vmatpush.bf16.msra.mxu0 0
        %476 = vmatpush.bf16.msra.mxu0 0
        %477 = vmatpush.bf16.msra.mxu0 0
        %478 = vmatpush.bf16.msra.mxu0 0
        %479 = vmatpush.bf16.msra.mxu0 0
        %480 = vmatpush.bf16.msra.mxu0 0
        %481 = vmatpush.bf16.msra.mxu0 %v472
        %482 = vmatmul.bf16.gmra.mxu0 %v468
        %v483 = vpop.f32.mrf.mxu0
        %v484 = vadd.f32 0.0, %v483
        %v485 = vpop.f32.mrf.mxu0
        %486 = vdwg.mxu0
        %v487 = vadd.f32 %v465, %v484
        %488 = vst.msk [vmem:[#allocation3] sm:$0xff] %vm443, %v487
        // Predicated region
        $region49: #{tpu_custom_call.1} parent=39 // pred_check
          %p489 = pneg %p326
        $region50: #{tpu_custom_call.1} parent=39 // pred_check_branch
          %491 = sbr.rel (%p489) target = $region52
        $region51: #{tpu_custom_call.1} parent=39 // pred_region
          %v492 = vld [vmem:[#allocation4] sm:$0xff]
          %v493 = vld [vmem:[#allocation3] sm:$0xff]
          %v494 = vpack.c.bf16 %v493, %v493
          %v495 = vld [vmem:[%s323] sm:$0x3]
          %v497 = vsel %vm443, %v494, 0
          %vm499 = vcmask 1041408
          %v501 = vsel %vm499, %v495, 0
          %503 = vmatpush.bf16.msra.mxu0 0
          %504 = vmatpush.bf16.msra.mxu0 0
          %505 = vmatpush.bf16.msra.mxu0 0
          %506 = vmatpush.bf16.msra.mxu0 0
          %507 = vmatpush.bf16.msra.mxu0 0
          %508 = vmatpush.bf16.msra.mxu0 0
          %509 = vmatpush.bf16.msra.mxu0 0
          %510 = vmatpush.bf16.msra.mxu0 %v501
          %511 = vmatmul.bf16.gmra.mxu0 %v497
          %v512 = vpop.f32.mrf.mxu0
          %v513 = vadd.f32 0.0, %v512
          %v514 = vpop.f32.mrf.mxu0
          %515 = vdwg.mxu0
          %v516 = vadd.f32 %v492, %v513
          %517 = vst.msk [vmem:[#allocation4] sm:$0xff] %vm398, %v516
        $region52: #{tpu_custom_call.1} parent=39 // pred_fallthru
          _
        %p518 = scmp.eq.s32.totalorder %s27, 7
        %p519 = pnand %p518, %p326
        %p520 = pneg %p519
        // Predicated region
        $region53: #{tpu_custom_call.1} parent=39 // pred_check
          _
        $region54: #{tpu_custom_call.1} parent=39 // pred_check_branch
          %522 = sbr.rel (%p519) target = $region56
        $region55: #{tpu_custom_call.1} parent=39 // pred_region
          %v523 = vld [vmem:[#allocation4] sm:$0xff]
          %v524 = vld [vmem:[%s4] sm:$0x1]
          %v526 = vperm.slane %v524, 0
          %v528 = vadd.f32 %v523, %v526
          %529 = vst.msk [vmem:[%s300] sm:$0xff] %vm398, %v528
        $region56: #{tpu_custom_call.1} parent=39 // pred_fallthru
          _
        %s530 = sand.u32 %s184, 1
        %s531 = scalar_lea.sflag [#allocation6], %s530
        %s532 = sand.u32 %s184, 1
        %s533 = smul.addr %s532, 8
        %s534 = scalar_lea.vmem [#allocation5], %s533
        // Predicated region
        $region57: #{tpu_custom_call.1} parent=39 // pred_check
          %p535 = pneg %p194
        $region58: #{tpu_custom_call.1} parent=39 // pred_check_branch
          %537 = sbr.rel (%p535) target = $region60
        $region59: #{tpu_custom_call.1} parent=39 // pred_region
          %539 = vsyncadd %s531, 0
          %s540 = sadd.s32 %s26, %s25
          %s541 = smul.addr %s540, 8
          %s542 = scalar_lea.hbm %s5, %s541
          %s544 = sshll.u32 %s534, 4
          %s545 = int_to_ptr.vmem [resolvable:$true] %s544
          %s546 = sshll.u32 %s542, 4
          %s547 = int_to_ptr.hbm [resolvable:$true] %s546
          %549 = dma.vmem_to_hbm [thread:$0]  %s545, 128, %s547, %s531
        $region60: #{tpu_custom_call.1} parent=39 // pred_fallthru
          _
      $region40: #{tpu_custom_call.1} parent=5 // pred_fallthru
        _
      %p550 = scmp.le.s32.totalorder 2, %s14
      // Predicated region
      $region61: #{tpu_custom_call.1} parent=5 // pred_check
        %p551 = pneg %p550
      $region62: #{tpu_custom_call.1} parent=5 // pred_check_branch
        %553 = sbr.rel (%p551) target = $region64
      $region63: #{tpu_custom_call.1} parent=5 // pred_region
        %s554 = ssub.s32 %s14, 2
        // Predicated region
        $region65: #{tpu_custom_call.1} parent=63 // pred_check
          %p555 = pneg %p200
        $region66: #{tpu_custom_call.1} parent=63 // pred_check_branch
          %557 = sbr.rel (%p555) target = $region68
        $region67: #{tpu_custom_call.1} parent=63 // pred_region
          %s558 = sand.u32 %s185, 1
          %s559 = scalar_lea.sflag [#allocation6], %s558
          %s560 = sand.u32 %s185, 1
          %s561 = smul.addr %s560, 8
          %s562 = scalar_lea.vmem [#allocation5], %s561
          %564 = dma.done %s559, 128
        $region68: #{tpu_custom_call.1} parent=63 // pred_fallthru
          _
      $region64: #{tpu_custom_call.1} parent=5 // pred_fallthru
        _
    $region6: #{tpu_custom_call.1} parent=1 // loop_footer
      %s18 = sadd.s32 1, %s14
    $region7: #{tpu_custom_call.1} parent=1 // loop_footer_branch
      %13 = sbr.rel target = $region3
    $region8: #{tpu_custom_call.1} parent=1 // loop_exit
      _
    %565 = vsyncpa [#allocation6], 1
    %s566 = scalar_lea.sflag [#allocation6], 1
    %567 = vsyncpa %s566, 1

</llo_original>
